<compile_context>
chip_gen: v6e
topology: v6e:2x2x1
jax: 0.10.0
libtpu: 0.0.40
codegen_flags: <defaults>
</compile_context>

<pallas_src>
import functools

import jax
import jax.numpy as jnp
from jax import lax
from jax.experimental import pallas as pl
from jax.experimental.pallas import tpu as pltpu


_CHUNK = 32  # rows per inner-loop step: ~7 live (32,128) f32 tensors ≈ 28 vregs,
             # so the whole K-unrolled chunk stays in registers.


def _mother(t, t2, e, wavelet_type):
    if wavelet_type == 'mexican_hat':
        return (1.0 - t2) * e
    elif wavelet_type == 'morlet':
        # TODO(synk): cos is not a native EUP op; a bounded-range minimax
        # polynomial (Gaussian envelope kills |t|>~4) could cut the morlet
        # per-k cost — verify via the bundle dump before rewriting.
        return e * jnp.cos(5.0 * t)
    raise NotImplementedError(wavelet_type)


def wavelet_kernel(x_ref, w_ref, inv_s_ref, trans_ref, o_ref, *,
                   num_wavelets, wavelet_type):
    # Parameter tiles are tiny ((K, 128) = 1 vreg each); load once per step.
    w = w_ref[...].astype(jnp.float32)
    inv_s = inv_s_ref[...].astype(jnp.float32)
    trans = trans_ref[...].astype(jnp.float32)

    n_chunks = x_ref.shape[0] // _CHUNK

    def chunk_body(c, carry):
        r = pl.multiple_of(c * _CHUNK, _CHUNK)
        x = x_ref[pl.ds(r, _CHUNK), :].astype(jnp.float32)       # (_CHUNK, L)

        # k = 0 peeled: initialize acc directly (no zeros + add).
        t = (x - trans[0:1, :]) * inv_s[0:1, :]
        t2 = t * t
        acc = w[0:1, :] * _mother(t, t2, jnp.exp(-0.5 * t2), wavelet_type)

        for k in range(1, num_wavelets):                          # static unroll (K small)
            t = (x - trans[k:k + 1, :]) * inv_s[k:k + 1, :]
            t2 = t * t
            acc = acc + w[k:k + 1, :] * _mother(t, t2, jnp.exp(-0.5 * t2),
                                                wavelet_type)

        o_ref[pl.ds(r, _CHUNK), :] = acc.astype(o_ref.dtype)
        return carry

    lax.fori_loop(0, n_chunks, chunk_body, 0)


def wavelet_basis(x, weights, raw_scales, translations, *,
                  wavelet_type='mexican_hat', batch_tile=None):
    B, D = x.shape
    D2, K = weights.shape
    assert D2 == D

    f32 = jnp.float32
    # Hoist parameter-only transcendental work out of the kernel; multiply by
    # the exact reciprocal in-kernel (one extra rounding vs the reference divide,
    # within the 1e-5 tolerance). TODO(synk): bf16 exp on v6e/v7x if tolerance relaxes.
    inv_scales = 1.0 / (jax.nn.softplus(raw_scales.astype(f32)) + 1e-6)
    w = weights.astype(f32)
    tr = translations.astype(f32)
    x_f = x

    LANE = 128
    # ---- lane-dense layout for the output -------------------------------
    # Pad output_dim up to a divisor of 128 (D < 128) or a multiple of 128
    # (D >= 128). Padded dims get zero weights, so they contribute exactly 0.
    Dp = pl.next_power_of_2(D) if D < LANE else pl.cdiv(D, LANE) * LANE
    if Dp != D:
        pad_d = Dp - D
        x_f = jnp.pad(x_f, ((0, 0), (0, pad_d)))
        w = jnp.pad(w, ((0, pad_d), (0, 0)))
        inv_scales = jnp.pad(inv_scales, ((0, pad_d), (0, 0)))
        tr = jnp.pad(tr, ((0, pad_d), (0, 0)))

    w_t, s_t, t_t = w.T, inv_scales.T, tr.T                        # (K, Dp)

    # ---- lane packing: fold `pack` batch rows into one 128-lane row ----
    pack = LANE // Dp if Dp < LANE else 1
    if pack > 1:
        rows_padded = pl.cdiv(B, pack) * pack
        if rows_padded != B:
            x_f = jnp.pad(x_f, ((0, rows_padded - B), (0, 0)))
        x_f = x_f.reshape(rows_padded // pack, pack * Dp)          # (Bp, 128)
        w_t = jnp.tile(w_t, (1, pack))
        s_t = jnp.tile(s_t, (1, pack))
        t_t = jnp.tile(t_t, (1, pack))
    Bp, L = x_f.shape

    # ---- batch tiling ----------------------------------------------------
    # Aim for ~8 grid steps so the ("parallel",) axis shards across both v7x
    # TensorCores, while keeping tiles a multiple of _CHUNK (>=8 sublanes) and
    # capped at 1024 rows (~0.5 MiB/buffer) to amortize the ~0.35us/step
    # pipeline overhead on single-TC v5e/v6e.
    if batch_tile is None:
        batch_tile = pl.cdiv(Bp, 8)
    batch_tile = max(_CHUNK, min(1024, pl.cdiv(batch_tile, _CHUNK) * _CHUNK))

    # Pad the packed batch so every grid block is fully in bounds (padded rows
    # compute finite garbage and are sliced off after the call).
    Bp_pad = pl.cdiv(Bp, batch_tile) * batch_tile
    if Bp_pad != Bp:
        x_f = jnp.pad(x_f, ((0, Bp_pad - Bp), (0, 0)))

    kernel = functools.partial(wavelet_kernel,
                               num_wavelets=K, wavelet_type=wavelet_type)
    out = pl.pallas_call(
        kernel,
        out_shape=jax.ShapeDtypeStruct((Bp_pad, L), x.dtype),
        grid_spec=pltpu.PrefetchScalarGridSpec(
            num_scalar_prefetch=0,
            grid=(Bp_pad // batch_tile,),
            in_specs=[
                pl.BlockSpec((batch_tile, L), lambda i: (i, 0)),
                pl.BlockSpec((K, L), lambda i: (0, 0)),
                pl.BlockSpec((K, L), lambda i: (0, 0)),
                pl.BlockSpec((K, L), lambda i: (0, 0)),
            ],
            out_specs=pl.BlockSpec((batch_tile, L), lambda i: (i, 0)),
        ),
        compiler_params=pltpu.CompilerParams(
            dimension_semantics=("parallel",)),
    )(x_f, w_t, s_t, t_t)

    out = out[:Bp]
    if pack > 1:
        out = out.reshape(Bp * pack, Dp)
    return out[:B, :D]


def wavelet_basis_ref(x, weights, raw_scales, translations,
                      wavelet_type='mexican_hat'):
    scales = jax.nn.softplus(raw_scales)[None] + 1e-6              # (1, D, K)
    t = (x[..., None] - translations[None]) / scales               # (B, D, K)
    if wavelet_type == 'mexican_hat':
        wav = (1.0 - t ** 2) * jnp.exp(-0.5 * t ** 2)
    else:
        wav = jnp.exp(-0.5 * t ** 2) * jnp.cos(5.0 * t)
    return (weights[None] * wav).sum(-1)


if __name__ == "__main__":
    # config: output_dim=32, num_wavelets=8, learnable params ~ randn * 0.1
    batch, output_dim, num_wavelets = 8, 32, 8

    key = jax.random.PRNGKey(0)
    kx, kw, ks, kt = jax.random.split(key, 4)
    x = jax.random.normal(kx, (batch, output_dim), dtype=jnp.float32)
    weights = 0.1 * jax.random.normal(kw, (output_dim, num_wavelets), jnp.float32)
    raw_scales = 0.1 * jax.random.normal(ks, (output_dim, num_wavelets), jnp.float32)
    translations = 0.1 * jax.random.normal(kt, (output_dim, num_wavelets), jnp.float32)

    ok = True
    for wtype in ('mexican_hat', 'morlet'):
        out = wavelet_basis(x, weights, raw_scales, translations,
                            wavelet_type=wtype)
        out = jax.block_until_ready(out)
        ref = wavelet_basis_ref(x, weights, raw_scales, translations,
                                wavelet_type=wtype)
        ok = ok and (out.shape == (batch, output_dim))
        ok = ok and bool(jnp.allclose(out, ref, atol=1e-5, rtol=1e-5))
    assert ok

    print("KERNEL_OK")
</pallas_src>

<mosaic_0001>
module attributes {stable_mosaic.version = 11 : i64} {
  func.func @wavelet_kernel(%arg0: i32, %arg1: memref<32x128xf32, #tpu.memory_space<vmem>>, %arg2: memref<8x128xf32, #tpu.memory_space<vmem>>, %arg3: memref<8x128xf32, #tpu.memory_space<vmem>>, %arg4: memref<8x128xf32, #tpu.memory_space<vmem>>, %arg5: memref<32x128xf32, #tpu.memory_space<vmem>>) attributes {dimension_semantics = [#tpu.dimension_semantics<parallel>], iteration_bounds = array<i64: 1>, scalar_prefetch = 0 : i64, scratch_operands = 0 : i64, tpu.core_type = #tpu.core_type<tc>, window_params = [{transform_indices = @transform_0, window_bounds = array<i64: 32, 128>}, {pipeline_mode = #tpu.pipeline_mode<synchronous>, transform_indices = @transform_1, window_bounds = array<i64: 8, 128>}, {pipeline_mode = #tpu.pipeline_mode<synchronous>, transform_indices = @transform_2, window_bounds = array<i64: 8, 128>}, {pipeline_mode = #tpu.pipeline_mode<synchronous>, transform_indices = @transform_3, window_bounds = array<i64: 8, 128>}, {transform_indices = @transform_4, window_bounds = array<i64: 32, 128>}]} {
    %c0 = arith.constant 0 : index
    %c0_0 = arith.constant 0 : index
    %0 = vector.load %arg2[%c0, %c0_0] : memref<8x128xf32, #tpu.memory_space<vmem>>, vector<8x128xf32>
    %c0_1 = arith.constant 0 : index
    %c0_2 = arith.constant 0 : index
    %1 = vector.load %arg3[%c0_1, %c0_2] : memref<8x128xf32, #tpu.memory_space<vmem>>, vector<8x128xf32>
    %c0_3 = arith.constant 0 : index
    %c0_4 = arith.constant 0 : index
    %2 = vector.load %arg4[%c0_3, %c0_4] : memref<8x128xf32, #tpu.memory_space<vmem>>, vector<8x128xf32>
    %c0_i32 = arith.constant 0 : i32
    %c32_i32 = arith.constant 32 : i32
    %3 = arith.muli %c0_i32, %c32_i32 : i32
    %4 = tpu.assume_multiple %3, 32 : i32
    %5 = arith.index_cast %4 : i32 to index
    %c0_5 = arith.constant 0 : index
    %6 = vector.load %arg1[%5, %c0_5] : memref<32x128xf32, #tpu.memory_space<vmem>>, vector<32x128xf32>
    %7 = vector.extract_strided_slice %2 {offsets = [0, 0], sizes = [1, 128], strides = [1, 1]} : vector<8x128xf32> to vector<1x128xf32>
    %8 = vector.broadcast %7 : vector<1x128xf32> to vector<32x128xf32>
    %9 = arith.subf %6, %8 : vector<32x128xf32>
    %10 = vector.extract_strided_slice %1 {offsets = [0, 0], sizes = [1, 128], strides = [1, 1]} : vector<8x128xf32> to vector<1x128xf32>
    %11 = vector.broadcast %10 : vector<1x128xf32> to vector<32x128xf32>
    %12 = arith.mulf %9, %11 : vector<32x128xf32>
    %13 = arith.mulf %12, %12 : vector<32x128xf32>
    %14 = vector.extract_strided_slice %0 {offsets = [0, 0], sizes = [1, 128], strides = [1, 1]} : vector<8x128xf32> to vector<1x128xf32>
    %cst = arith.constant -5.000000e-01 : f32
    %15 = vector.broadcast %cst : f32 to vector<32x128xf32>
    %16 = arith.mulf %15, %13 : vector<32x128xf32>
    %17 = math.exp %16 : vector<32x128xf32>
    %cst_6 = arith.constant 1.000000e+00 : f32
    %18 = vector.broadcast %cst_6 : f32 to vector<32x128xf32>
    %19 = arith.subf %18, %13 : vector<32x128xf32>
    %20 = arith.mulf %19, %17 : vector<32x128xf32>
    %21 = vector.broadcast %14 : vector<1x128xf32> to vector<32x128xf32>
    %22 = arith.mulf %21, %20 : vector<32x128xf32>
    %23 = vector.extract_strided_slice %2 {offsets = [1, 0], sizes = [1, 128], strides = [1, 1]} : vector<8x128xf32> to vector<1x128xf32>
    %24 = vector.broadcast %23 : vector<1x128xf32> to vector<32x128xf32>
    %25 = arith.subf %6, %24 : vector<32x128xf32>
    %26 = vector.extract_strided_slice %1 {offsets = [1, 0], sizes = [1, 128], strides = [1, 1]} : vector<8x128xf32> to vector<1x128xf32>
    %27 = vector.broadcast %26 : vector<1x128xf32> to vector<32x128xf32>
    %28 = arith.mulf %25, %27 : vector<32x128xf32>
    %29 = arith.mulf %28, %28 : vector<32x128xf32>
    %30 = vector.extract_strided_slice %0 {offsets = [1, 0], sizes = [1, 128], strides = [1, 1]} : vector<8x128xf32> to vector<1x128xf32>
    %cst_7 = arith.constant -5.000000e-01 : f32
    %31 = vector.broadcast %cst_7 : f32 to vector<32x128xf32>
    %32 = arith.mulf %31, %29 : vector<32x128xf32>
    %33 = math.exp %32 : vector<32x128xf32>
    %cst_8 = arith.constant 1.000000e+00 : f32
    %34 = vector.broadcast %cst_8 : f32 to vector<32x128xf32>
    %35 = arith.subf %34, %29 : vector<32x128xf32>
    %36 = arith.mulf %35, %33 : vector<32x128xf32>
    %37 = vector.broadcast %30 : vector<1x128xf32> to vector<32x128xf32>
    %38 = arith.mulf %37, %36 : vector<32x128xf32>
    %39 = arith.addf %22, %38 : vector<32x128xf32>
    %40 = vector.extract_strided_slice %2 {offsets = [2, 0], sizes = [1, 128], strides = [1, 1]} : vector<8x128xf32> to vector<1x128xf32>
    %41 = vector.broadcast %40 : vector<1x128xf32> to vector<32x128xf32>
    %42 = arith.subf %6, %41 : vector<32x128xf32>
    %43 = vector.extract_strided_slice %1 {offsets = [2, 0], sizes = [1, 128], strides = [1, 1]} : vector<8x128xf32> to vector<1x128xf32>
    %44 = vector.broadcast %43 : vector<1x128xf32> to vector<32x128xf32>
    %45 = arith.mulf %42, %44 : vector<32x128xf32>
    %46 = arith.mulf %45, %45 : vector<32x128xf32>
    %47 = vector.extract_strided_slice %0 {offsets = [2, 0], sizes = [1, 128], strides = [1, 1]} : vector<8x128xf32> to vector<1x128xf32>
    %cst_9 = arith.constant -5.000000e-01 : f32
    %48 = vector.broadcast %cst_9 : f32 to vector<32x128xf32>
    %49 = arith.mulf %48, %46 : vector<32x128xf32>
    %50 = math.exp %49 : vector<32x128xf32>
    %cst_10 = arith.constant 1.000000e+00 : f32
    %51 = vector.broadcast %cst_10 : f32 to vector<32x128xf32>
    %52 = arith.subf %51, %46 : vector<32x128xf32>
    %53 = arith.mulf %52, %50 : vector<32x128xf32>
    %54 = vector.broadcast %47 : vector<1x128xf32> to vector<32x128xf32>
    %55 = arith.mulf %54, %53 : vector<32x128xf32>
    %56 = arith.addf %39, %55 : vector<32x128xf32>
    %57 = vector.extract_strided_slice %2 {offsets = [3, 0], sizes = [1, 128], strides = [1, 1]} : vector<8x128xf32> to vector<1x128xf32>
    %58 = vector.broadcast %57 : vector<1x128xf32> to vector<32x128xf32>
    %59 = arith.subf %6, %58 : vector<32x128xf32>
    %60 = vector.extract_strided_slice %1 {offsets = [3, 0], sizes = [1, 128], strides = [1, 1]} : vector<8x128xf32> to vector<1x128xf32>
    %61 = vector.broadcast %60 : vector<1x128xf32> to vector<32x128xf32>
    %62 = arith.mulf %59, %61 : vector<32x128xf32>
    %63 = arith.mulf %62, %62 : vector<32x128xf32>
    %64 = vector.extract_strided_slice %0 {offsets = [3, 0], sizes = [1, 128], strides = [1, 1]} : vector<8x128xf32> to vector<1x128xf32>
    %cst_11 = arith.constant -5.000000e-01 : f32
    %65 = vector.broadcast %cst_11 : f32 to vector<32x128xf32>
    %66 = arith.mulf %65, %63 : vector<32x128xf32>
    %67 = math.exp %66 : vector<32x128xf32>
    %cst_12 = arith.constant 1.000000e+00 : f32
    %68 = vector.broadcast %cst_12 : f32 to vector<32x128xf32>
    %69 = arith.subf %68, %63 : vector<32x128xf32>
    %70 = arith.mulf %69, %67 : vector<32x128xf32>
    %71 = vector.broadcast %64 : vector<1x128xf32> to vector<32x128xf32>
    %72 = arith.mulf %71, %70 : vector<32x128xf32>
    %73 = arith.addf %56, %72 : vector<32x128xf32>
    %74 = vector.extract_strided_slice %2 {offsets = [4, 0], sizes = [1, 128], strides = [1, 1]} : vector<8x128xf32> to vector<1x128xf32>
    %75 = vector.broadcast %74 : vector<1x128xf32> to vector<32x128xf32>
    %76 = arith.subf %6, %75 : vector<32x128xf32>
    %77 = vector.extract_strided_slice %1 {offsets = [4, 0], sizes = [1, 128], strides = [1, 1]} : vector<8x128xf32> to vector<1x128xf32>
    %78 = vector.broadcast %77 : vector<1x128xf32> to vector<32x128xf32>
    %79 = arith.mulf %76, %78 : vector<32x128xf32>
    %80 = arith.mulf %79, %79 : vector<32x128xf32>
    %81 = vector.extract_strided_slice %0 {offsets = [4, 0], sizes = [1, 128], strides = [1, 1]} : vector<8x128xf32> to vector<1x128xf32>
    %cst_13 = arith.constant -5.000000e-01 : f32
    %82 = vector.broadcast %cst_13 : f32 to vector<32x128xf32>
    %83 = arith.mulf %82, %80 : vector<32x128xf32>
    %84 = math.exp %83 : vector<32x128xf32>
    %cst_14 = arith.constant 1.000000e+00 : f32
    %85 = vector.broadcast %cst_14 : f32 to vector<32x128xf32>
    %86 = arith.subf %85, %80 : vector<32x128xf32>
    %87 = arith.mulf %86, %84 : vector<32x128xf32>
    %88 = vector.broadcast %81 : vector<1x128xf32> to vector<32x128xf32>
    %89 = arith.mulf %88, %87 : vector<32x128xf32>
    %90 = arith.addf %73, %89 : vector<32x128xf32>
    %91 = vector.extract_strided_slice %2 {offsets = [5, 0], sizes = [1, 128], strides = [1, 1]} : vector<8x128xf32> to vector<1x128xf32>
    %92 = vector.broadcast %91 : vector<1x128xf32> to vector<32x128xf32>
    %93 = arith.subf %6, %92 : vector<32x128xf32>
    %94 = vector.extract_strided_slice %1 {offsets = [5, 0], sizes = [1, 128], strides = [1, 1]} : vector<8x128xf32> to vector<1x128xf32>
    %95 = vector.broadcast %94 : vector<1x128xf32> to vector<32x128xf32>
    %96 = arith.mulf %93, %95 : vector<32x128xf32>
    %97 = arith.mulf %96, %96 : vector<32x128xf32>
    %98 = vector.extract_strided_slice %0 {offsets = [5, 0], sizes = [1, 128], strides = [1, 1]} : vector<8x128xf32> to vector<1x128xf32>
    %cst_15 = arith.constant -5.000000e-01 : f32
    %99 = vector.broadcast %cst_15 : f32 to vector<32x128xf32>
    %100 = arith.mulf %99, %97 : vector<32x128xf32>
    %101 = math.exp %100 : vector<32x128xf32>
    %cst_16 = arith.constant 1.000000e+00 : f32
    %102 = vector.broadcast %cst_16 : f32 to vector<32x128xf32>
    %103 = arith.subf %102, %97 : vector<32x128xf32>
    %104 = arith.mulf %103, %101 : vector<32x128xf32>
    %105 = vector.broadcast %98 : vector<1x128xf32> to vector<32x128xf32>
    %106 = arith.mulf %105, %104 : vector<32x128xf32>
    %107 = arith.addf %90, %106 : vector<32x128xf32>
    %108 = vector.extract_strided_slice %2 {offsets = [6, 0], sizes = [1, 128], strides = [1, 1]} : vector<8x128xf32> to vector<1x128xf32>
    %109 = vector.broadcast %108 : vector<1x128xf32> to vector<32x128xf32>
    %110 = arith.subf %6, %109 : vector<32x128xf32>
    %111 = vector.extract_strided_slice %1 {offsets = [6, 0], sizes = [1, 128], strides = [1, 1]} : vector<8x128xf32> to vector<1x128xf32>
    %112 = vector.broadcast %111 : vector<1x128xf32> to vector<32x128xf32>
    %113 = arith.mulf %110, %112 : vector<32x128xf32>
    %114 = arith.mulf %113, %113 : vector<32x128xf32>
    %115 = vector.extract_strided_slice %0 {offsets = [6, 0], sizes = [1, 128], strides = [1, 1]} : vector<8x128xf32> to vector<1x128xf32>
    %cst_17 = arith.constant -5.000000e-01 : f32
    %116 = vector.broadcast %cst_17 : f32 to vector<32x128xf32>
    %117 = arith.mulf %116, %114 : vector<32x128xf32>
    %118 = math.exp %117 : vector<32x128xf32>
    %cst_18 = arith.constant 1.000000e+00 : f32
    %119 = vector.broadcast %cst_18 : f32 to vector<32x128xf32>
    %120 = arith.subf %119, %114 : vector<32x128xf32>
    %121 = arith.mulf %120, %118 : vector<32x128xf32>
    %122 = vector.broadcast %115 : vector<1x128xf32> to vector<32x128xf32>
    %123 = arith.mulf %122, %121 : vector<32x128xf32>
    %124 = arith.addf %107, %123 : vector<32x128xf32>
    %125 = vector.extract_strided_slice %2 {offsets = [7, 0], sizes = [1, 128], strides = [1, 1]} : vector<8x128xf32> to vector<1x128xf32>
    %126 = vector.broadcast %125 : vector<1x128xf32> to vector<32x128xf32>
    %127 = arith.subf %6, %126 : vector<32x128xf32>
    %128 = vector.extract_strided_slice %1 {offsets = [7, 0], sizes = [1, 128], strides = [1, 1]} : vector<8x128xf32> to vector<1x128xf32>
    %129 = vector.broadcast %128 : vector<1x128xf32> to vector<32x128xf32>
    %130 = arith.mulf %127, %129 : vector<32x128xf32>
    %131 = arith.mulf %130, %130 : vector<32x128xf32>
    %132 = vector.extract_strided_slice %0 {offsets = [7, 0], sizes = [1, 128], strides = [1, 1]} : vector<8x128xf32> to vector<1x128xf32>
    %cst_19 = arith.constant -5.000000e-01 : f32
    %133 = vector.broadcast %cst_19 : f32 to vector<32x128xf32>
    %134 = arith.mulf %133, %131 : vector<32x128xf32>
    %135 = math.exp %134 : vector<32x128xf32>
    %cst_20 = arith.constant 1.000000e+00 : f32
    %136 = vector.broadcast %cst_20 : f32 to vector<32x128xf32>
    %137 = arith.subf %136, %131 : vector<32x128xf32>
    %138 = arith.mulf %137, %135 : vector<32x128xf32>
    %139 = vector.broadcast %132 : vector<1x128xf32> to vector<32x128xf32>
    %140 = arith.mulf %139, %138 : vector<32x128xf32>
    %141 = arith.addf %124, %140 : vector<32x128xf32>
    %142 = arith.index_cast %4 : i32 to index
    %c0_21 = arith.constant 0 : index
    %143 = vector.load %arg5[%142, %c0_21] : memref<32x128xf32, #tpu.memory_space<vmem>>, vector<32x128xf32>
    tpu.vector_store %arg5[%142, %c0_21], %141 {strides = array<i32>} : memref<32x128xf32, #tpu.memory_space<vmem>>, vector<32x128xf32>,
    %c1_i32 = arith.constant 1 : i32
    return
  }
  func.func @transform_0(%arg0: i32) -> (i32, i32) {
    %c0_i32 = arith.constant 0 : i32
    %c0_i32_0 = arith.constant 0 : i32
    return %arg0, %c0_i32 : i32, i32
  }
  func.func @transform_1(%arg0: i32) -> (i32, i32) {
    %c0_i32 = arith.constant 0 : i32
    %c0_i32_0 = arith.constant 0 : i32
    %c0_i32_1 = arith.constant 0 : i32
    return %c0_i32, %c0_i32_0 : i32, i32
  }
  func.func @transform_2(%arg0: i32) -> (i32, i32) {
    %c0_i32 = arith.constant 0 : i32
    %c0_i32_0 = arith.constant 0 : i32
    %c0_i32_1 = arith.constant 0 : i32
    return %c0_i32, %c0_i32_0 : i32, i32
  }
  func.func @transform_3(%arg0: i32) -> (i32, i32) {
    %c0_i32 = arith.constant 0 : i32
    %c0_i32_0 = arith.constant 0 : i32
    %c0_i32_1 = arith.constant 0 : i32
    return %c0_i32, %c0_i32_0 : i32, i32
  }
  func.func @transform_4(%arg0: i32) -> (i32, i32) {
    %c0_i32 = arith.constant 0 : i32
    %c0_i32_0 = arith.constant 0 : i32
    return %arg0, %c0_i32 : i32, i32
  }
}

</mosaic_0001>

<llo_original>
// kernel: tpu_custom_call.1
$region0: #{tpu_custom_call.1}
  #allocation0 [shape = 'u32[]', space=smem, size = 0x4, offset = 0x4, fixed_abs, tag = 'smem constant byte address 0x4 - core index']
  #allocation1 [shape = 'u32[144,128]{1,0:T(1,128)}', space=vmem, size = 0x12000, scoped, tag = 'internal scratch']
  %s0 = inlined_call_operand.hbm [shape: f32[32,128], index: 0, kind: input, shape index: {}]
  %s1 = inlined_call_operand.hbm [shape: f32[8,128], index: 1, kind: input, shape index: {}]
  %s2 = inlined_call_operand.hbm [shape: f32[8,128], index: 2, kind: input, shape index: {}]
  %s3 = inlined_call_operand.hbm [shape: f32[8,128], index: 3, kind: input, shape index: {}]
  %s4 = inlined_call_operand.hbm [shape: f32[32,128], index: 4, kind: output, shape index: {}]
  %s5 = sld [smem:[#allocation0]]
  $region42: #{tpu_custom_call.1} parent=0
    _
  %s7 = ssub.s32 1, %s5
  %s8 = scalar_select 0, %s7, %s5
  $region1: #{tpu_custom_call.1} parent=0
    #allocation2 [shape = 'u8[16384]{0}', space=vmem, size = 0x4000, scoped, tag = 'input window, operand 0, single buffered']
    #allocation3 [shape = 's32[1]{0}', space=sflag, size = 0x4, scoped, tag = 'scoped memory for tpu_custom_call.1']
    #allocation4 [shape = 's32[1]{0}', space=sflag, size = 0x4, scoped, tag = 'scoped memory for tpu_custom_call.1']
    #allocation5 [shape = 'u8[4096]{0}', space=vmem, size = 0x1000, scoped, tag = 'input window, operand 1, single buffered']
    #allocation6 [shape = 's32[1]{0}', space=sflag, size = 0x4, scoped, tag = 'scoped memory for tpu_custom_call.1']
    #allocation7 [shape = 'u8[4096]{0}', space=vmem, size = 0x1000, scoped, tag = 'input window, operand 2, single buffered']
    #allocation8 [shape = 'u8[4096]{0}', space=vmem, size = 0x1000, scoped, tag = 'input window, operand 3, single buffered']
    #allocation9 [shape = 's32[1]{0}', space=sflag, size = 0x4, scoped, tag = 'scoped memory for tpu_custom_call.1']
    #allocation10 [shape = 'u8[16384]{0}', space=vmem, size = 0x4000, scoped, tag = 'output window, operand 0, single buffered']
    %9 = vsyncpa [#allocation3], 0
    %10 = vsyncpa [#allocation6], 0
    %11 = vsyncpa [#allocation9], 0
    %12 = vsyncpa [#allocation4], 0
    // Predicated region
    $region2: #{tpu_custom_call.1} parent=1 // pred_check
      _
    $region3: #{tpu_custom_call.1} parent=1 // pred_check_branch
      %14 = sbr.rel (0) target = $region5
    $region4: #{tpu_custom_call.1} parent=1 // pred_region
      %s16 = ssub.s32 512, 512
      %17 = vsyncadd [#allocation3], %s16
      %s18 = sshll.u32 [#allocation2], 4
      %s19 = int_to_ptr.vmem [resolvable:$true] %s18
      %24 = dma.hbm_to_vmem [thread:$0]  %s0, 512, %s19, [#allocation3], 128, 128, 8
    $region5: #{tpu_custom_call.1} parent=1 // pred_fallthru
      _
    // Predicated region
    $region6: #{tpu_custom_call.1} parent=1 // pred_check
      _
    $region7: #{tpu_custom_call.1} parent=1 // pred_check_branch
      %26 = sbr.rel (0) target = $region9
    $region8: #{tpu_custom_call.1} parent=1 // pred_region
      %s28 = ssub.s32 128, 128
      %29 = vsyncadd [#allocation6], %s28
      %s31 = sshll.u32 [#allocation5], 4
      %s32 = int_to_ptr.vmem [resolvable:$true] %s31
      %34 = dma.hbm_to_vmem [thread:$0]  %s1, 128, %s32, [#allocation6]
    $region9: #{tpu_custom_call.1} parent=1 // pred_fallthru
      _
    // Predicated region
    $region10: #{tpu_custom_call.1} parent=1 // pred_check
      _
    $region11: #{tpu_custom_call.1} parent=1 // pred_check_branch
      %36 = sbr.rel (0) target = $region13
    $region12: #{tpu_custom_call.1} parent=1 // pred_region
      %s38 = ssub.s32 128, 128
      %39 = vsyncadd [#allocation6], %s38
      %s41 = sshll.u32 [#allocation7], 4
      %s42 = int_to_ptr.vmem [resolvable:$true] %s41
      %44 = dma.hbm_to_vmem [thread:$0]  %s2, 128, %s42, [#allocation6]
    $region13: #{tpu_custom_call.1} parent=1 // pred_fallthru
      _
    // Predicated region
    $region14: #{tpu_custom_call.1} parent=1 // pred_check
      _
    $region15: #{tpu_custom_call.1} parent=1 // pred_check_branch
      %46 = sbr.rel (0) target = $region17
    $region16: #{tpu_custom_call.1} parent=1 // pred_region
      %s48 = ssub.s32 128, 128
      %49 = vsyncadd [#allocation9], %s48
      %s51 = sshll.u32 [#allocation8], 4
      %s52 = int_to_ptr.vmem [resolvable:$true] %s51
      %54 = dma.hbm_to_vmem [thread:$0]  %s3, 128, %s52, [#allocation9]
    $region17: #{tpu_custom_call.1} parent=1 // pred_fallthru
      _
    // Predicated region
    $region18: #{tpu_custom_call.1} parent=1 // pred_check
      _
    $region19: #{tpu_custom_call.1} parent=1 // pred_check_branch
      %56 = sbr.rel (0) target = $region21
    $region20: #{tpu_custom_call.1} parent=1 // pred_region
      %57 = dma.done [#allocation3], 512
    $region21: #{tpu_custom_call.1} parent=1 // pred_fallthru
      _
    // Predicated region
    $region22: #{tpu_custom_call.1} parent=1 // pred_check
      _
    $region23: #{tpu_custom_call.1} parent=1 // pred_check_branch
      %59 = sbr.rel (0) target = $region25
    $region24: #{tpu_custom_call.1} parent=1 // pred_region
      %60 = dma.done [#allocation6], 128
    $region25: #{tpu_custom_call.1} parent=1 // pred_fallthru
      _
    // Predicated region
    $region26: #{tpu_custom_call.1} parent=1 // pred_check
      _
    $region27: #{tpu_custom_call.1} parent=1 // pred_check_branch
      %62 = sbr.rel (0) target = $region29
    $region28: #{tpu_custom_call.1} parent=1 // pred_region
      %63 = dma.done [#allocation6], 128
    $region29: #{tpu_custom_call.1} parent=1 // pred_fallthru
      _
    // Predicated region
    $region30: #{tpu_custom_call.1} parent=1 // pred_check
      _
    $region31: #{tpu_custom_call.1} parent=1 // pred_check_branch
      %65 = sbr.rel (0) target = $region33
    $region32: #{tpu_custom_call.1} parent=1 // pred_region
      %66 = dma.done [#allocation9], 128
    $region33: #{tpu_custom_call.1} parent=1 // pred_fallthru
      _
    %v67 = vld [vmem:[#allocation5] sm:$0xff]
    %v68 = vld [vmem:[#allocation7] sm:$0xff]
    %v69 = vld [vmem:[#allocation8] sm:$0xff]
    %v70 = vld [vmem:[#allocation2] sm:$0xff]
    %v71 = vld [vmem:[#allocation2 + $0x8] sm:$0xff]
    %v72 = vld [vmem:[#allocation2 + $0x10] sm:$0xff]
    %v73 = vld [vmem:[#allocation2 + $0x18] sm:$0xff]
    %v74 = vlaneseq
    %v75 = vshrl.u32 %v74, 7
    %v76 = vsub.s32 0, %v75
    %v77 = vrot.slane %v69, %v76
    %v78 = vsub.f32 %v70, %v77
    %v79 = vsub.f32 %v71, %v77
    %v80 = vsub.f32 %v72, %v77
    %v81 = vsub.f32 %v73, %v77
    %v82 = vlaneseq
    %v83 = vshrl.u32 %v82, 7
    %v84 = vsub.s32 0, %v83
    %v85 = vrot.slane %v68, %v84
    %v86 = vmul.f32 %v78, %v85
    %v87 = vmul.f32 %v79, %v85
    %v88 = vmul.f32 %v80, %v85
    %v89 = vmul.f32 %v81, %v85
    %v90 = vmul.f32 %v86, %v86
    %v91 = vmul.f32 %v87, %v87
    %v92 = vmul.f32 %v88, %v88
    %v93 = vmul.f32 %v89, %v89
    %v94 = vmul.f32 %v90, -0.5
    %v95 = vmul.f32 %v91, -0.5
    %v96 = vmul.f32 %v92, -0.5
    %v97 = vmul.f32 %v93, -0.5
    %v98 = vmul.f32 %v94, 1.442695
    %v99 = vpow.pop %v98
    %v100 = vmul.f32 %v95, 1.442695
    %v101 = vpow.pop %v100
    %v102 = vmul.f32 %v96, 1.442695
    %v103 = vpow.pop %v102
    %v104 = vmul.f32 %v97, 1.442695
    %v105 = vpow.pop %v104
    %v106 = vsub.f32 1.0, %v90
    %v107 = vsub.f32 1.0, %v91
    %v108 = vsub.f32 1.0, %v92
    %v109 = vsub.f32 1.0, %v93
    %v110 = vmul.f32 %v106, %v99
    %v111 = vmul.f32 %v107, %v101
    %v112 = vmul.f32 %v108, %v103
    %v113 = vmul.f32 %v109, %v105
    %v114 = vlaneseq
    %v115 = vshrl.u32 %v114, 7
    %v116 = vsub.s32 0, %v115
    %v117 = vrot.slane %v67, %v116
    %v118 = vmul.f32 %v117, %v110
    %v119 = vmul.f32 %v117, %v111
    %v120 = vmul.f32 %v117, %v112
    %v121 = vmul.f32 %v117, %v113
    %v122 = vlaneseq
    %v123 = vshrl.u32 %v122, 7
    %v124 = vsub.s32 1, %v123
    %v125 = vrot.slane %v69, %v124
    %v126 = vsub.f32 %v70, %v125
    %v127 = vsub.f32 %v71, %v125
    %v128 = vsub.f32 %v72, %v125
    %v129 = vsub.f32 %v73, %v125
    %v130 = vlaneseq
    %v131 = vshrl.u32 %v130, 7
    %v132 = vsub.s32 1, %v131
    %v133 = vrot.slane %v68, %v132
    %v134 = vmul.f32 %v126, %v133
    %v135 = vmul.f32 %v127, %v133
    %v136 = vmul.f32 %v128, %v133
    %v137 = vmul.f32 %v129, %v133
    %v138 = vmul.f32 %v134, %v134
    %v139 = vmul.f32 %v135, %v135
    %v140 = vmul.f32 %v136, %v136
    %v141 = vmul.f32 %v137, %v137
    %v142 = vmul.f32 %v138, -0.5
    %v143 = vmul.f32 %v139, -0.5
    %v144 = vmul.f32 %v140, -0.5
    %v145 = vmul.f32 %v141, -0.5
    %v146 = vmul.f32 %v142, 1.442695
    %v147 = vpow.pop %v146
    %v148 = vmul.f32 %v143, 1.442695
    %v149 = vpow.pop %v148
    %v150 = vmul.f32 %v144, 1.442695
    %v151 = vpow.pop %v150
    %v152 = vmul.f32 %v145, 1.442695
    %v153 = vpow.pop %v152
    %v154 = vsub.f32 1.0, %v138
    %v155 = vsub.f32 1.0, %v139
    %v156 = vsub.f32 1.0, %v140
    %v157 = vsub.f32 1.0, %v141
    %v158 = vmul.f32 %v154, %v147
    %v159 = vmul.f32 %v155, %v149
    %v160 = vmul.f32 %v156, %v151
    %v161 = vmul.f32 %v157, %v153
    %v162 = vlaneseq
    %v163 = vshrl.u32 %v162, 7
    %v164 = vsub.s32 1, %v163
    %v165 = vrot.slane %v67, %v164
    %v166 = vmul.f32 %v165, %v158
    %v167 = vmul.f32 %v165, %v159
    %v168 = vmul.f32 %v165, %v160
    %v169 = vmul.f32 %v165, %v161
    %v170 = vadd.f32 %v118, %v166
    %v171 = vadd.f32 %v119, %v167
    %v172 = vadd.f32 %v120, %v168
    %v173 = vadd.f32 %v121, %v169
    %v174 = vlaneseq
    %v175 = vshrl.u32 %v174, 7
    %v176 = vsub.s32 2, %v175
    %v177 = vrot.slane %v69, %v176
    %v178 = vsub.f32 %v70, %v177
    %v179 = vsub.f32 %v71, %v177
    %v180 = vsub.f32 %v72, %v177
    %v181 = vsub.f32 %v73, %v177
    %v182 = vlaneseq
    %v183 = vshrl.u32 %v182, 7
    %v184 = vsub.s32 2, %v183
    %v185 = vrot.slane %v68, %v184
    %v186 = vmul.f32 %v178, %v185
    %v187 = vmul.f32 %v179, %v185
    %v188 = vmul.f32 %v180, %v185
    %v189 = vmul.f32 %v181, %v185
    %v190 = vmul.f32 %v186, %v186
    %v191 = vmul.f32 %v187, %v187
    %v192 = vmul.f32 %v188, %v188
    %v193 = vmul.f32 %v189, %v189
    %v194 = vmul.f32 %v190, -0.5
    %v195 = vmul.f32 %v191, -0.5
    %v196 = vmul.f32 %v192, -0.5
    %v197 = vmul.f32 %v193, -0.5
    %v198 = vmul.f32 %v194, 1.442695
    %v199 = vpow.pop %v198
    %v200 = vmul.f32 %v195, 1.442695
    %v201 = vpow.pop %v200
    %v202 = vmul.f32 %v196, 1.442695
    %v203 = vpow.pop %v202
    %v204 = vmul.f32 %v197, 1.442695
    %v205 = vpow.pop %v204
    %v206 = vsub.f32 1.0, %v190
    %v207 = vsub.f32 1.0, %v191
    %v208 = vsub.f32 1.0, %v192
    %v209 = vsub.f32 1.0, %v193
    %v210 = vmul.f32 %v206, %v199
    %v211 = vmul.f32 %v207, %v201
    %v212 = vmul.f32 %v208, %v203
    %v213 = vmul.f32 %v209, %v205
    %v214 = vlaneseq
    %v215 = vshrl.u32 %v214, 7
    %v216 = vsub.s32 2, %v215
    %v217 = vrot.slane %v67, %v216
    %v218 = vmul.f32 %v217, %v210
    %v219 = vmul.f32 %v217, %v211
    %v220 = vmul.f32 %v217, %v212
    %v221 = vmul.f32 %v217, %v213
    %v222 = vadd.f32 %v170, %v218
    %v223 = vadd.f32 %v171, %v219
    %v224 = vadd.f32 %v172, %v220
    %v225 = vadd.f32 %v173, %v221
    %v226 = vlaneseq
    %v227 = vshrl.u32 %v226, 7
    %v228 = vsub.s32 3, %v227
    %v229 = vrot.slane %v69, %v228
    %v230 = vsub.f32 %v70, %v229
    %v231 = vsub.f32 %v71, %v229
    %v232 = vsub.f32 %v72, %v229
    %v233 = vsub.f32 %v73, %v229
    %v234 = vlaneseq
    %v235 = vshrl.u32 %v234, 7
    %v236 = vsub.s32 3, %v235
    %v237 = vrot.slane %v68, %v236
    %v238 = vmul.f32 %v230, %v237
    %v239 = vmul.f32 %v231, %v237
    %v240 = vmul.f32 %v232, %v237
    %v241 = vmul.f32 %v233, %v237
    %v242 = vmul.f32 %v238, %v238
    %v243 = vmul.f32 %v239, %v239
    %v244 = vmul.f32 %v240, %v240
    %v245 = vmul.f32 %v241, %v241
    %v246 = vmul.f32 %v242, -0.5
    %v247 = vmul.f32 %v243, -0.5
    %v248 = vmul.f32 %v244, -0.5
    %v249 = vmul.f32 %v245, -0.5
    %v250 = vmul.f32 %v246, 1.442695
    %v251 = vpow.pop %v250
    %v252 = vmul.f32 %v247, 1.442695
    %v253 = vpow.pop %v252
    %v254 = vmul.f32 %v248, 1.442695
    %v255 = vpow.pop %v254
    %v256 = vmul.f32 %v249, 1.442695
    %v257 = vpow.pop %v256
    %v258 = vsub.f32 1.0, %v242
    %v259 = vsub.f32 1.0, %v243
    %v260 = vsub.f32 1.0, %v244
    %v261 = vsub.f32 1.0, %v245
    %v262 = vmul.f32 %v258, %v251
    %v263 = vmul.f32 %v259, %v253
    %v264 = vmul.f32 %v260, %v255
    %v265 = vmul.f32 %v261, %v257
    %v266 = vlaneseq
    %v267 = vshrl.u32 %v266, 7
    %v268 = vsub.s32 3, %v267
    %v269 = vrot.slane %v67, %v268
    %v270 = vmul.f32 %v269, %v262
    %v271 = vmul.f32 %v269, %v263
    %v272 = vmul.f32 %v269, %v264
    %v273 = vmul.f32 %v269, %v265
    %v274 = vadd.f32 %v222, %v270
    %v275 = vadd.f32 %v223, %v271
    %v276 = vadd.f32 %v224, %v272
    %v277 = vadd.f32 %v225, %v273
    %v278 = vlaneseq
    %v279 = vshrl.u32 %v278, 7
    %v280 = vsub.s32 4, %v279
    %v281 = vrot.slane %v69, %v280
    %v282 = vsub.f32 %v70, %v281
    %v283 = vsub.f32 %v71, %v281
    %v284 = vsub.f32 %v72, %v281
    %v285 = vsub.f32 %v73, %v281
    %v286 = vlaneseq
    %v287 = vshrl.u32 %v286, 7
    %v288 = vsub.s32 4, %v287
    %v289 = vrot.slane %v68, %v288
    %v290 = vmul.f32 %v282, %v289
    %v291 = vmul.f32 %v283, %v289
    %v292 = vmul.f32 %v284, %v289
    %v293 = vmul.f32 %v285, %v289
    %v294 = vmul.f32 %v290, %v290
    %v295 = vmul.f32 %v291, %v291
    %v296 = vmul.f32 %v292, %v292
    %v297 = vmul.f32 %v293, %v293
    %v298 = vmul.f32 %v294, -0.5
    %v299 = vmul.f32 %v295, -0.5
    %v300 = vmul.f32 %v296, -0.5
    %v301 = vmul.f32 %v297, -0.5
    %v302 = vmul.f32 %v298, 1.442695
    %v303 = vpow.pop %v302
    %v304 = vmul.f32 %v299, 1.442695
    %v305 = vpow.pop %v304
    %v306 = vmul.f32 %v300, 1.442695
    %v307 = vpow.pop %v306
    %v308 = vmul.f32 %v301, 1.442695
    %v309 = vpow.pop %v308
    %v310 = vsub.f32 1.0, %v294
    %v311 = vsub.f32 1.0, %v295
    %v312 = vsub.f32 1.0, %v296
    %v313 = vsub.f32 1.0, %v297
    %v314 = vmul.f32 %v310, %v303
    %v315 = vmul.f32 %v311, %v305
    %v316 = vmul.f32 %v312, %v307
    %v317 = vmul.f32 %v313, %v309
    %v318 = vlaneseq
    %v319 = vshrl.u32 %v318, 7
    %v320 = vsub.s32 4, %v319
    %v321 = vrot.slane %v67, %v320
    %v322 = vmul.f32 %v321, %v314
    %v323 = vmul.f32 %v321, %v315
    %v324 = vmul.f32 %v321, %v316
    %v325 = vmul.f32 %v321, %v317
    %v326 = vadd.f32 %v274, %v322
    %v327 = vadd.f32 %v275, %v323
    %v328 = vadd.f32 %v276, %v324
    %v329 = vadd.f32 %v277, %v325
    %v330 = vlaneseq
    %v331 = vshrl.u32 %v330, 7
    %v332 = vsub.s32 5, %v331
    %v333 = vrot.slane %v69, %v332
    %v334 = vsub.f32 %v70, %v333
    %v335 = vsub.f32 %v71, %v333
    %v336 = vsub.f32 %v72, %v333
    %v337 = vsub.f32 %v73, %v333
    %v338 = vlaneseq
    %v339 = vshrl.u32 %v338, 7
    %v340 = vsub.s32 5, %v339
    %v341 = vrot.slane %v68, %v340
    %v342 = vmul.f32 %v334, %v341
    %v343 = vmul.f32 %v335, %v341
    %v344 = vmul.f32 %v336, %v341
    %v345 = vmul.f32 %v337, %v341
    %v346 = vmul.f32 %v342, %v342
    %v347 = vmul.f32 %v343, %v343
    %v348 = vmul.f32 %v344, %v344
    %v349 = vmul.f32 %v345, %v345
    %v350 = vmul.f32 %v346, -0.5
    %v351 = vmul.f32 %v347, -0.5
    %v352 = vmul.f32 %v348, -0.5
    %v353 = vmul.f32 %v349, -0.5
    %v354 = vmul.f32 %v350, 1.442695
    %v355 = vpow.pop %v354
    %v356 = vmul.f32 %v351, 1.442695
    %v357 = vpow.pop %v356
    %v358 = vmul.f32 %v352, 1.442695
    %v359 = vpow.pop %v358
    %v360 = vmul.f32 %v353, 1.442695
    %v361 = vpow.pop %v360
    %v362 = vsub.f32 1.0, %v346
    %v363 = vsub.f32 1.0, %v347
    %v364 = vsub.f32 1.0, %v348
    %v365 = vsub.f32 1.0, %v349
    %v366 = vmul.f32 %v362, %v355
    %v367 = vmul.f32 %v363, %v357
    %v368 = vmul.f32 %v364, %v359
    %v369 = vmul.f32 %v365, %v361
    %v370 = vlaneseq
    %v371 = vshrl.u32 %v370, 7
    %v372 = vsub.s32 5, %v371
    %v373 = vrot.slane %v67, %v372
    %v374 = vmul.f32 %v373, %v366
    %v375 = vmul.f32 %v373, %v367
    %v376 = vmul.f32 %v373, %v368
    %v377 = vmul.f32 %v373, %v369
    %v378 = vadd.f32 %v326, %v374
    %v379 = vadd.f32 %v327, %v375
    %v380 = vadd.f32 %v328, %v376
    %v381 = vadd.f32 %v329, %v377
    %v382 = vlaneseq
    %v383 = vshrl.u32 %v382, 7
    %v384 = vsub.s32 6, %v383
    %v385 = vrot.slane %v69, %v384
    %v386 = vsub.f32 %v70, %v385
    %v387 = vsub.f32 %v71, %v385
    %v388 = vsub.f32 %v72, %v385
    %v389 = vsub.f32 %v73, %v385
    %v390 = vlaneseq
    %v391 = vshrl.u32 %v390, 7
    %v392 = vsub.s32 6, %v391
    %v393 = vrot.slane %v68, %v392
    %v394 = vmul.f32 %v386, %v393
    %v395 = vmul.f32 %v387, %v393
    %v396 = vmul.f32 %v388, %v393
    %v397 = vmul.f32 %v389, %v393
    %v398 = vmul.f32 %v394, %v394
    %v399 = vmul.f32 %v395, %v395
    %v400 = vmul.f32 %v396, %v396
    %v401 = vmul.f32 %v397, %v397
    %v402 = vmul.f32 %v398, -0.5
    %v403 = vmul.f32 %v399, -0.5
    %v404 = vmul.f32 %v400, -0.5
    %v405 = vmul.f32 %v401, -0.5
    %v406 = vmul.f32 %v402, 1.442695
    %v407 = vpow.pop %v406
    %v408 = vmul.f32 %v403, 1.442695
    %v409 = vpow.pop %v408
    %v410 = vmul.f32 %v404, 1.442695
    %v411 = vpow.pop %v410
    %v412 = vmul.f32 %v405, 1.442695
    %v413 = vpow.pop %v412
    %v414 = vsub.f32 1.0, %v398
    %v415 = vsub.f32 1.0, %v399
    %v416 = vsub.f32 1.0, %v400
    %v417 = vsub.f32 1.0, %v401
    %v418 = vmul.f32 %v414, %v407
    %v419 = vmul.f32 %v415, %v409
    %v420 = vmul.f32 %v416, %v411
    %v421 = vmul.f32 %v417, %v413
    %v422 = vlaneseq
    %v423 = vshrl.u32 %v422, 7
    %v424 = vsub.s32 6, %v423
    %v425 = vrot.slane %v67, %v424
    %v426 = vmul.f32 %v425, %v418
    %v427 = vmul.f32 %v425, %v419
    %v428 = vmul.f32 %v425, %v420
    %v429 = vmul.f32 %v425, %v421
    %v430 = vadd.f32 %v378, %v426
    %v431 = vadd.f32 %v379, %v427
    %v432 = vadd.f32 %v380, %v428
    %v433 = vadd.f32 %v381, %v429
    %v434 = vlaneseq
    %v435 = vshrl.u32 %v434, 7
    %v436 = vsub.s32 7, %v435
    %v437 = vrot.slane %v69, %v436
    %v438 = vsub.f32 %v70, %v437
    %v439 = vsub.f32 %v71, %v437
    %v440 = vsub.f32 %v72, %v437
    %v441 = vsub.f32 %v73, %v437
    %v442 = vlaneseq
    %v443 = vshrl.u32 %v442, 7
    %v444 = vsub.s32 7, %v443
    %v445 = vrot.slane %v68, %v444
    %v446 = vmul.f32 %v438, %v445
    %v447 = vmul.f32 %v439, %v445
    %v448 = vmul.f32 %v440, %v445
    %v449 = vmul.f32 %v441, %v445
    %v450 = vmul.f32 %v446, %v446
    %v451 = vmul.f32 %v447, %v447
    %v452 = vmul.f32 %v448, %v448
    %v453 = vmul.f32 %v449, %v449
    %v454 = vmul.f32 %v450, -0.5
    %v455 = vmul.f32 %v451, -0.5
    %v456 = vmul.f32 %v452, -0.5
    %v457 = vmul.f32 %v453, -0.5
    %v458 = vmul.f32 %v454, 1.442695
    %v459 = vpow.pop %v458
    %v460 = vmul.f32 %v455, 1.442695
    %v461 = vpow.pop %v460
    %v462 = vmul.f32 %v456, 1.442695
    %v463 = vpow.pop %v462
    %v464 = vmul.f32 %v457, 1.442695
    %v465 = vpow.pop %v464
    %v466 = vsub.f32 1.0, %v450
    %v467 = vsub.f32 1.0, %v451
    %v468 = vsub.f32 1.0, %v452
    %v469 = vsub.f32 1.0, %v453
    %v470 = vmul.f32 %v466, %v459
    %v471 = vmul.f32 %v467, %v461
    %v472 = vmul.f32 %v468, %v463
    %v473 = vmul.f32 %v469, %v465
    %v474 = vlaneseq
    %v475 = vshrl.u32 %v474, 7
    %v476 = vsub.s32 7, %v475
    %v477 = vrot.slane %v67, %v476
    %v478 = vmul.f32 %v477, %v470
    %v479 = vmul.f32 %v477, %v471
    %v480 = vmul.f32 %v477, %v472
    %v481 = vmul.f32 %v477, %v473
    %v482 = vadd.f32 %v430, %v478
    %v483 = vadd.f32 %v431, %v479
    %v484 = vadd.f32 %v432, %v480
    %v485 = vadd.f32 %v433, %v481
    %486 = vst [vmem:[#allocation10] sm:$0xff] %v482
    %487 = vst [vmem:[#allocation10 + $0x8] sm:$0xff] %v483
    %488 = vst [vmem:[#allocation10 + $0x10] sm:$0xff] %v484
    %489 = vst [vmem:[#allocation10 + $0x18] sm:$0xff] %v485
    // Predicated region
    $region34: #{tpu_custom_call.1} parent=1 // pred_check
      _
    $region35: #{tpu_custom_call.1} parent=1 // pred_check_branch
      %491 = sbr.rel (0) target = $region37
    $region36: #{tpu_custom_call.1} parent=1 // pred_region
      %s493 = ssub.s32 512, 512
      %494 = vsyncadd [#allocation4], %s493
      %s495 = sshll.u32 [#allocation10], 4
      %s496 = int_to_ptr.vmem [resolvable:$true] %s495
      %501 = dma.vmem_to_hbm [thread:$0]  %s496, 512, %s4, [#allocation4], 128, 128, 8
    $region37: #{tpu_custom_call.1} parent=1 // pred_fallthru
      _
    // Predicated region
    $region38: #{tpu_custom_call.1} parent=1 // pred_check
      _
    $region39: #{tpu_custom_call.1} parent=1 // pred_check_branch
      %503 = sbr.rel (0) target = $region41
    $region40: #{tpu_custom_call.1} parent=1 // pred_region
      %504 = dma.done [#allocation4], 512
    $region41: #{tpu_custom_call.1} parent=1 // pred_fallthru
      _
    %505 = vsyncpa [#allocation3], 1
    %506 = vsyncpa [#allocation6], 1
    %507 = vsyncpa [#allocation9], 1
    %508 = vsyncpa [#allocation4], 1

</llo_original>
